<compile_context>
chip_gen: v7x
topology: tpu7x:2x2x1
jax: 0.10.0
libtpu: 0.0.40
codegen_flags: <defaults>
</compile_context>

<pallas_src>
import functools
import math

import jax
import jax.numpy as jnp
from jax.experimental import pallas as pl
from jax.experimental.pallas import tpu as pltpu


def _cdiv(a, b):
    return -(-a // b)


def _round_up(a, m):
    return _cdiv(a, m) * m


def _dwconv1d_kernel(x_ref, wb_ref, o_ref, *scratch, kernel_size: int, padding: int,
                     mult: int, l_out: int):
    # x_ref : (rows_blk, L_in)              input rows (N*C_in folded), unpadded
    # wb_ref: (rows_blk, mult*K + mult)     resident f32 taps + bias, per-row layout
    # o_ref : (rows_blk, L_out)             if mult == 1
    #         (rows_blk, mult, L_out)       if mult > 1 (lane-dense per-m stores)
    # scratch (optional): (rows_blk, L_in + 2*padding) f32 padded/upcast window
    rows, l_in = x_ref.shape
    k = kernel_size
    wb = wb_ref[...]                                   # f32, resident across grid

    if scratch:
        xpad = scratch[0]
        # Pad lanes are rewritten every step (2*padding lanes -> negligible); a
        # one-time pl.when(program_id == 0) init would miss the second core when
        # the "parallel" grid axis is split across TensorCores.
        if padding > 0:
            xpad[:, :padding] = jnp.zeros((rows, padding), jnp.float32)
            xpad[:, padding + l_in:] = jnp.zeros((rows, padding), jnp.float32)
        # The only full-tile copy in the kernel: upcast to f32 once per element.
        xpad[:, padding:padding + l_in] = x_ref[...].astype(jnp.float32)

        def window(kk):
            return xpad[:, kk:kk + l_out]
    else:
        # padding == 0 and x already f32: shifted windows come straight from x.
        def window(kk):
            return x_ref[:, kk:kk + l_out]

    for m in range(mult):                              # static, usually 1
        acc = jnp.zeros((rows, l_out), jnp.float32)
        for kk in range(k):                            # static unrolled f32 MAC (VPU)
            tap = wb[:, m * k + kk:m * k + kk + 1]     # (rows, 1)
            acc = acc + tap * window(kk)
        acc = acc + wb[:, mult * k + m:mult * k + m + 1]   # bias
        if mult == 1:
            o_ref[...] = acc.astype(o_ref.dtype)
        else:
            o_ref[:, m, :] = acc.astype(o_ref.dtype)   # lane-dense store per m


def _pick_rows_block(n_rows: int, quantum: int, bytes_per_row: int,
                     target_bytes: int) -> int:
    """Rows per block: a multiple of `quantum`, sized to ~target_bytes live VMEM."""
    max_rows = _round_up(n_rows, quantum)
    cap_rows = max(quantum, (target_bytes // max(bytes_per_row, 1)) // quantum * quantum)
    rows_blk = min(max_rows, cap_rows)
    nb = _cdiv(n_rows, rows_blk)
    if nb > 1 and nb % 2 == 1:
        # Prefer an even block count (balanced split across v7x's 2 TensorCores).
        alt = max(quantum, _round_up(_cdiv(n_rows, nb + 1), quantum))
        if _cdiv(n_rows, alt) % 2 == 0:
            rows_blk = alt
    return rows_blk


def depthwise_conv1d(x, weight, bias, *, padding: int, target_block_bytes=None):
    """Depthwise 1D conv matching torch.nn.Conv1d(in, out, k, padding, groups=in).

    x:      (N, C_in, L)
    weight: (C_out, 1, K)   (groups = C_in, so in_channels/groups == 1)
    bias:   (C_out,)
    returns (N, C_out, L_out) with L_out = L + 2*padding - K + 1  (stride=1, dilation=1)
    """
    n, c_in, l_in = x.shape
    c_out, w_in, k = weight.shape
    assert w_in == 1, "depthwise conv expects weight shape (C_out, 1, K)"
    assert c_out % c_in == 0, "out_channels must be a multiple of in_channels"
    mult = c_out // c_in
    l_out = l_in + 2 * padding - k + 1
    assert l_out > 0, "invalid length/kernel/padding combination"

    n_rows = n * c_in
    x2d = x.reshape(n_rows, l_in)                      # metadata-only reshape
    use_pad_buf = (padding > 0) or (x.dtype != jnp.float32)

    itemsize = x.dtype.itemsize
    sub_pack = max(8, 32 // itemsize)                  # 8 (f32) / 16 (bf16) / 32 (int8)
    quantum = math.lcm(c_in, sub_pack)                 # keeps channel phase static per block

    w_cols = mult * k + mult
    lane_in = _round_up(l_in, 128)
    lane_out = _round_up(l_out, 128)
    lane_pad = _round_up(l_in + 2 * padding, 128)
    lane_wb = _round_up(w_cols, 128)
    out_row_bytes = (lane_out * itemsize if mult == 1
                     else _round_up(mult, sub_pack) * lane_out * itemsize)
    bytes_per_row = (2 * lane_in * itemsize            # double-buffered input block
                     + 2 * out_row_bytes               # double-buffered output block
                     + (lane_pad * 4 if use_pad_buf else 0)   # persistent f32 window
                     + 2 * lane_out * 4                # f32 acc / tap temporaries
                     + 2 * lane_wb * 4)                # resident taps (conservative)

    try:
        vmem_cap = int(pltpu.get_tpu_info().vmem_capacity_bytes)
    except Exception:
        vmem_cap = 64 << 20                            # v7x per-TC value: safe lower bound
    if target_block_bytes is None:
        target_block_bytes = (6 << 20) if vmem_cap >= (100 << 20) else (4 << 20)

    rows_blk = _pick_rows_block(n_rows, quantum, bytes_per_row, target_block_bytes)
    num_blocks = _cdiv(n_rows, rows_blk)

    est_vmem = rows_blk * bytes_per_row + (2 << 20)
    vmem_limit = (min(est_vmem, int(vmem_cap * 0.85))
                  if est_vmem > (16 << 20) else None)

    # Taps + bias packed into a single tiny f32 operand, expanded only to rows_blk
    # rows (not N*C_in) and fetched into VMEM exactly once (constant index_map).
    # Layout: wb[r, m*K + kk] = weight[(r % C_in)*mult + m, 0, kk];
    #         wb[r, mult*K + m] = bias[(r % C_in)*mult + m].
    wb_small = jnp.concatenate(
        [weight.reshape(c_in, mult * k), bias.reshape(c_in, mult)], axis=-1,
    ).astype(jnp.float32)
    wb_rows = jnp.tile(wb_small, (rows_blk // c_in, 1))        # (rows_blk, mult*K+mult)

    if mult == 1:
        out_shape = jax.ShapeDtypeStruct((n_rows, l_out), x.dtype)
        out_spec = pl.BlockSpec((rows_blk, l_out), lambda i: (i, 0))
    else:
        out_shape = jax.ShapeDtypeStruct((n_rows, mult, l_out), x.dtype)
        out_spec = pl.BlockSpec((rows_blk, mult, l_out), lambda i: (i, 0, 0))

    scratch_shapes = ([pltpu.VMEM((rows_blk, l_in + 2 * padding), jnp.float32)]
                      if use_pad_buf else [])

    kernel = functools.partial(_dwconv1d_kernel, kernel_size=k, padding=padding,
                               mult=mult, l_out=l_out)

    out = pl.pallas_call(
        kernel,
        out_shape=out_shape,
        grid_spec=pltpu.PrefetchScalarGridSpec(
            num_scalar_prefetch=0,
            grid=(num_blocks,),
            in_specs=[
                pl.BlockSpec((rows_blk, l_in), lambda i: (i, 0)),
                pl.BlockSpec((rows_blk, w_cols), lambda i: (0, 0)),   # VMEM-resident taps
            ],
            out_specs=out_spec,
            scratch_shapes=scratch_shapes,
        ),
        compiler_params=pltpu.CompilerParams(
            dimension_semantics=("parallel",),
            vmem_limit_bytes=vmem_limit,
        ),
    )(x2d, wb_rows)

    # (N*C_in, [mult,] L_out) -> (N, C_out, L_out): metadata-only (group-major channels).
    return out.reshape(n, c_out, l_out)


if __name__ == "__main__":
    key = jax.random.PRNGKey(0)

    def reference(x, w, b, padding, groups):
        return jax.lax.conv_general_dilated(
            x, w, window_strides=(1,), padding=[(padding, padding)],
            dimension_numbers=("NCH", "OIH", "NCH"),
            feature_group_count=groups,
        ) + b.reshape(1, -1, 1)

    # (batch, in_c, out_c, K, padding, L, forced block-byte target or None)
    configs = [
        (2, 4, 8, 3, 1, 16, None),    # channel multiplier 2 -> 3-D lane-dense output path
        (2, 8, 8, 5, 2, 32, None),    # conformer-style: in == out, "same" padding
        (2, 4, 4, 3, 0, 24, None),    # padding == 0 fast path (no scratch window)
        (5, 4, 4, 3, 1, 32, 4096),    # tiny forced blocks -> multi-step grid + ragged last block
    ]
    for (batch, in_c, out_c, ksz, pad, length, tgt) in configs:
        key, k1, k2, k3 = jax.random.split(key, 4)
        x = jax.random.normal(k1, (batch, in_c, length), dtype=jnp.float32)
        w = jax.random.normal(k2, (out_c, 1, ksz), dtype=jnp.float32) * 0.1
        b = jax.random.normal(k3, (out_c,), dtype=jnp.float32) * 0.1
        out = jax.block_until_ready(
            depthwise_conv1d(x, w, b, padding=pad, target_block_bytes=tgt))
        l_out = length + 2 * pad - ksz + 1
        assert out.shape == (batch, out_c, l_out), out.shape
        ref = reference(x, w, b, pad, in_c)
        assert jnp.allclose(out, ref, atol=1e-5, rtol=1e-5), \
            float(jnp.max(jnp.abs(out - ref)))

    print("KERNEL_OK")
</pallas_src>

<mosaic_0001>
module attributes {stable_mosaic.version = 11 : i64} {
  func.func @_dwconv1d_kernel(%arg0: i32, %arg1: memref<8x16xf32, #tpu.memory_space<vmem>>, %arg2: memref<8x8xf32, #tpu.memory_space<vmem>>, %arg3: memref<8x2x16xf32, #tpu.memory_space<vmem>>, %arg4: memref<8x18xf32, #tpu.memory_space<vmem>>) attributes {dimension_semantics = [#tpu.dimension_semantics<parallel>], iteration_bounds = array<i64: 1>, scalar_prefetch = 0 : i64, scratch_operands = 1 : i64, tpu.core_type = #tpu.core_type<tc>, window_params = [{transform_indices = @transform_0, window_bounds = array<i64: 8, 16>}, {pipeline_mode = #tpu.pipeline_mode<synchronous>, transform_indices = @transform_1, window_bounds = array<i64: 8, 8>}, {transform_indices = @transform_2, window_bounds = array<i64: 8, 2, 16>}]} {
    %c0 = arith.constant 0 : index
    %c0_0 = arith.constant 0 : index
    %0 = vector.load %arg2[%c0, %c0_0] : memref<8x8xf32, #tpu.memory_space<vmem>>, vector<8x8xf32>
    %cst = arith.constant 0.000000e+00 : f32
    %1 = vector.broadcast %cst : f32 to vector<8x1xf32>
    %c0_1 = arith.constant 0 : index
    %c0_2 = arith.constant 0 : index
    %2 = vector.load %arg4[%c0_1, %c0_2] : memref<8x18xf32, #tpu.memory_space<vmem>>, vector<8x1xf32>
    tpu.vector_store %arg4[%c0_1, %c0_2], %1 {strides = array<i32>} : memref<8x18xf32, #tpu.memory_space<vmem>>, vector<8x1xf32>,
    %cst_3 = arith.constant 0.000000e+00 : f32
    %3 = vector.broadcast %cst_3 : f32 to vector<8x1xf32>
    %c0_4 = arith.constant 0 : index
    %c17 = arith.constant 17 : index
    %4 = vector.load %arg4[%c0_4, %c17] : memref<8x18xf32, #tpu.memory_space<vmem>>, vector<8x1xf32>
    tpu.vector_store %arg4[%c0_4, %c17], %3 {strides = array<i32>} : memref<8x18xf32, #tpu.memory_space<vmem>>, vector<8x1xf32>,
    %c0_5 = arith.constant 0 : index
    %c0_6 = arith.constant 0 : index
    %5 = vector.load %arg1[%c0_5, %c0_6] : memref<8x16xf32, #tpu.memory_space<vmem>>, vector<8x16xf32>
    %c0_7 = arith.constant 0 : index
    %c1 = arith.constant 1 : index
    %6 = vector.load %arg4[%c0_7, %c1] : memref<8x18xf32, #tpu.memory_space<vmem>>, vector<8x16xf32>
    tpu.vector_store %arg4[%c0_7, %c1], %5 {strides = array<i32>} : memref<8x18xf32, #tpu.memory_space<vmem>>, vector<8x16xf32>,
    %cst_8 = arith.constant 0.000000e+00 : f32
    %7 = vector.broadcast %cst_8 : f32 to vector<8x16xf32>
    %8 = vector.extract_strided_slice %0 {offsets = [0, 0], sizes = [8, 1], strides = [1, 1]} : vector<8x8xf32> to vector<8x1xf32>
    %c0_9 = arith.constant 0 : index
    %c0_10 = arith.constant 0 : index
    %9 = vector.load %arg4[%c0_9, %c0_10] : memref<8x18xf32, #tpu.memory_space<vmem>>, vector<8x16xf32>
    %10 = vector.broadcast %8 : vector<8x1xf32> to vector<8x16xf32>
    %11 = arith.mulf %10, %9 : vector<8x16xf32>
    %12 = arith.addf %7, %11 : vector<8x16xf32>
    %13 = vector.extract_strided_slice %0 {offsets = [0, 1], sizes = [8, 1], strides = [1, 1]} : vector<8x8xf32> to vector<8x1xf32>
    %c0_11 = arith.constant 0 : index
    %c1_12 = arith.constant 1 : index
    %14 = vector.load %arg4[%c0_11, %c1_12] : memref<8x18xf32, #tpu.memory_space<vmem>>, vector<8x16xf32>
    %15 = vector.broadcast %13 : vector<8x1xf32> to vector<8x16xf32>
    %16 = arith.mulf %15, %14 : vector<8x16xf32>
    %17 = arith.addf %12, %16 : vector<8x16xf32>
    %18 = vector.extract_strided_slice %0 {offsets = [0, 2], sizes = [8, 1], strides = [1, 1]} : vector<8x8xf32> to vector<8x1xf32>
    %c0_13 = arith.constant 0 : index
    %c2 = arith.constant 2 : index
    %19 = vector.load %arg4[%c0_13, %c2] : memref<8x18xf32, #tpu.memory_space<vmem>>, vector<8x16xf32>
    %20 = vector.broadcast %18 : vector<8x1xf32> to vector<8x16xf32>
    %21 = arith.mulf %20, %19 : vector<8x16xf32>
    %22 = arith.addf %17, %21 : vector<8x16xf32>
    %23 = vector.extract_strided_slice %0 {offsets = [0, 6], sizes = [8, 1], strides = [1, 1]} : vector<8x8xf32> to vector<8x1xf32>
    %24 = vector.broadcast %23 : vector<8x1xf32> to vector<8x16xf32>
    %25 = arith.addf %22, %24 : vector<8x16xf32>
    %c0_14 = arith.constant 0 : index
    %c0_15 = arith.constant 0 : index
    %c0_16 = arith.constant 0 : index
    %26 = vector.load %arg3[%c0_14, %c0_15, %c0_16] : memref<8x2x16xf32, #tpu.memory_space<vmem>>, vector<8x1x16xf32>
    %27 = vector.shape_cast %26 : vector<8x1x16xf32> to vector<8x16xf32>
    %28 = vector.shape_cast %25 : vector<8x16xf32> to vector<8x1x16xf32>
    tpu.vector_store %arg3[%c0_14, %c0_15, %c0_16], %28 {strides = array<i32>} : memref<8x2x16xf32, #tpu.memory_space<vmem>>, vector<8x1x16xf32>,
    %cst_17 = arith.constant 0.000000e+00 : f32
    %29 = vector.broadcast %cst_17 : f32 to vector<8x16xf32>
    %30 = vector.extract_strided_slice %0 {offsets = [0, 3], sizes = [8, 1], strides = [1, 1]} : vector<8x8xf32> to vector<8x1xf32>
    %c0_18 = arith.constant 0 : index
    %c0_19 = arith.constant 0 : index
    %31 = vector.load %arg4[%c0_18, %c0_19] : memref<8x18xf32, #tpu.memory_space<vmem>>, vector<8x16xf32>
    %32 = vector.broadcast %30 : vector<8x1xf32> to vector<8x16xf32>
    %33 = arith.mulf %32, %31 : vector<8x16xf32>
    %34 = arith.addf %29, %33 : vector<8x16xf32>
    %35 = vector.extract_strided_slice %0 {offsets = [0, 4], sizes = [8, 1], strides = [1, 1]} : vector<8x8xf32> to vector<8x1xf32>
    %c0_20 = arith.constant 0 : index
    %c1_21 = arith.constant 1 : index
    %36 = vector.load %arg4[%c0_20, %c1_21] : memref<8x18xf32, #tpu.memory_space<vmem>>, vector<8x16xf32>
    %37 = vector.broadcast %35 : vector<8x1xf32> to vector<8x16xf32>
    %38 = arith.mulf %37, %36 : vector<8x16xf32>
    %39 = arith.addf %34, %38 : vector<8x16xf32>
    %40 = vector.extract_strided_slice %0 {offsets = [0, 5], sizes = [8, 1], strides = [1, 1]} : vector<8x8xf32> to vector<8x1xf32>
    %c0_22 = arith.constant 0 : index
    %c2_23 = arith.constant 2 : index
    %41 = vector.load %arg4[%c0_22, %c2_23] : memref<8x18xf32, #tpu.memory_space<vmem>>, vector<8x16xf32>
    %42 = vector.broadcast %40 : vector<8x1xf32> to vector<8x16xf32>
    %43 = arith.mulf %42, %41 : vector<8x16xf32>
    %44 = arith.addf %39, %43 : vector<8x16xf32>
    %45 = vector.extract_strided_slice %0 {offsets = [0, 7], sizes = [8, 1], strides = [1, 1]} : vector<8x8xf32> to vector<8x1xf32>
    %46 = vector.broadcast %45 : vector<8x1xf32> to vector<8x16xf32>
    %47 = arith.addf %44, %46 : vector<8x16xf32>
    %c0_24 = arith.constant 0 : index
    %c1_25 = arith.constant 1 : index
    %c0_26 = arith.constant 0 : index
    %48 = vector.load %arg3[%c0_24, %c1_25, %c0_26] : memref<8x2x16xf32, #tpu.memory_space<vmem>>, vector<8x1x16xf32>
    %49 = vector.shape_cast %48 : vector<8x1x16xf32> to vector<8x16xf32>
    %50 = vector.shape_cast %47 : vector<8x16xf32> to vector<8x1x16xf32>
    tpu.vector_store %arg3[%c0_24, %c1_25, %c0_26], %50 {strides = array<i32>} : memref<8x2x16xf32, #tpu.memory_space<vmem>>, vector<8x1x16xf32>,
    return
  }
  func.func @transform_0(%arg0: i32) -> (i32, i32) {
    %c0_i32 = arith.constant 0 : i32
    %c0_i32_0 = arith.constant 0 : i32
    return %arg0, %c0_i32 : i32, i32
  }
  func.func @transform_1(%arg0: i32) -> (i32, i32) {
    %c0_i32 = arith.constant 0 : i32
    %c0_i32_0 = arith.constant 0 : i32
    %c0_i32_1 = arith.constant 0 : i32
    return %c0_i32, %c0_i32_0 : i32, i32
  }
  func.func @transform_2(%arg0: i32) -> (i32, i32, i32) {
    %c0_i32 = arith.constant 0 : i32
    %c0_i32_0 = arith.constant 0 : i32
    %c0_i32_1 = arith.constant 0 : i32
    return %arg0, %c0_i32, %c0_i32_0 : i32, i32, i32
  }
}

</mosaic_0001>

<llo_original>
// kernel: tpu_custom_call.1
$region0: #{tpu_custom_call.1}
  #allocation0 [shape = 'u32[]', space=smem, size = 0x4, offset = 0x4, fixed_abs, tag = 'smem constant byte address 0x4 - core index']
  #allocation1 [shape = 'u32[144,128]{1,0:T(1,128)}', space=vmem, size = 0x12000, scoped, tag = 'internal scratch']
  #allocation2 [shape = 'f32[8,18]{1,0:T(8,128)}', space=vmem, size = 0x1000, scoped, tag = 'scratch operand']
  %s0 = inlined_call_operand.hbm [shape: f32[8,16], index: 0, kind: input, shape index: {}]
  %s1 = inlined_call_operand.hbm [shape: f32[8,8], index: 1, kind: input, shape index: {}]
  %s2 = inlined_call_operand.hbm [shape: f32[8,2,16], index: 2, kind: output, shape index: {}]
  %s3 = sld [smem:[#allocation0]]
  $region26: #{tpu_custom_call.1} parent=0
    _
  %s5 = ssub.s32 1, %s3
  %s6 = scalar_select 0, %s5, %s3
  $region1: #{tpu_custom_call.1} parent=0
    #allocation3 [shape = 'u8[4096]{0}', space=vmem, size = 0x1000, scoped, tag = 'input window, operand 0, single buffered']
    #allocation4 [shape = 's32[1]{0}', space=sflag, size = 0x4, scoped, tag = 'scoped memory for tpu_custom_call.1']
    #allocation5 [shape = 's32[1]{0}', space=sflag, size = 0x4, scoped, tag = 'scoped memory for tpu_custom_call.1']
    #allocation6 [shape = 'u8[4096]{0}', space=vmem, size = 0x1000, scoped, tag = 'input window, operand 1, single buffered']
    #allocation7 [shape = 's32[1]{0}', space=sflag, size = 0x4, scoped, tag = 'scoped memory for tpu_custom_call.1']
    #allocation8 [shape = 'u8[8192]{0}', space=vmem, size = 0x2000, scoped, tag = 'output window, operand 0, single buffered']
    %7 = vsyncpa [#allocation4], 0
    %8 = vsyncpa [#allocation7], 0
    %9 = vsyncpa [#allocation5], 0
    // Predicated region
    $region2: #{tpu_custom_call.1} parent=1 // pred_check
      _
    $region3: #{tpu_custom_call.1} parent=1 // pred_check_branch
      %11 = sbr.rel (0) target = $region5
    $region4: #{tpu_custom_call.1} parent=1 // pred_region
      %s13 = ssub.s32 128, 128
      %14 = vsyncadd [#allocation4], %s13
      %s16 = sshll.u32 [#allocation3], 4
      %s17 = int_to_ptr.vmem [resolvable:$true] %s16
      %19 = dma.hbm_to_vmem [thread:$0]  %s0, 128, %s17, [#allocation4]
    $region5: #{tpu_custom_call.1} parent=1 // pred_fallthru
      _
    // Predicated region
    $region6: #{tpu_custom_call.1} parent=1 // pred_check
      _
    $region7: #{tpu_custom_call.1} parent=1 // pred_check_branch
      %21 = sbr.rel (0) target = $region9
    $region8: #{tpu_custom_call.1} parent=1 // pred_region
      %s23 = ssub.s32 128, 128
      %24 = vsyncadd [#allocation7], %s23
      %s26 = sshll.u32 [#allocation6], 4
      %s27 = int_to_ptr.vmem [resolvable:$true] %s26
      %29 = dma.hbm_to_vmem [thread:$0]  %s1, 128, %s27, [#allocation7]
    $region9: #{tpu_custom_call.1} parent=1 // pred_fallthru
      _
    // Predicated region
    $region10: #{tpu_custom_call.1} parent=1 // pred_check
      _
    $region11: #{tpu_custom_call.1} parent=1 // pred_check_branch
      %31 = sbr.rel (0) target = $region13
    $region12: #{tpu_custom_call.1} parent=1 // pred_region
      %32 = dma.done [#allocation4], 128
    $region13: #{tpu_custom_call.1} parent=1 // pred_fallthru
      _
    // Predicated region
    $region14: #{tpu_custom_call.1} parent=1 // pred_check
      _
    $region15: #{tpu_custom_call.1} parent=1 // pred_check_branch
      %34 = sbr.rel (0) target = $region17
    $region16: #{tpu_custom_call.1} parent=1 // pred_region
      %35 = dma.done [#allocation7], 128
    $region17: #{tpu_custom_call.1} parent=1 // pred_fallthru
      _
    %v36 = vld [vmem:[#allocation6] sm:$0xff]
    %vm37 = vcmask 7168
    %38 = vst.msk [vmem:[#allocation2] sm:$0xff] %vm37, 0.0
    %vm39 = vcmask 146568
    %40 = vst.msk [vmem:[#allocation2] sm:$0xff] %vm39, 0.0
    %v41 = vld [vmem:[#allocation3] sm:$0xff]
    %43 = vrot.lane.b32.xlu0 %v41, 1
    %v44 = vpop.permute.xlu0 %43
    %vm46 = vcmask 138248
    %47 = vst.msk [vmem:[#allocation2] sm:$0xff] %vm46, %v44
    %v48 = vld [vmem:[#allocation2] sm:$0xff]
    %50 = vset.pattern.permute.xlu0 0
    %51 = vperm.xlu0 %50, %v36
    %v52 = vpop.permute.xlu0 %51
    %v54 = vmul.f32 %v52, %v48
    %v55 = vadd.f32 %v54, 0.0
    %56 = vset.pattern.permute.xlu0 1
    %57 = vperm.xlu0 %56, %v36
    %v58 = vpop.permute.xlu0 %57
    %v60 = vmul.f32 %v58, %v48
    %62 = vrot.lane.b32.xlu0 %v60, 127
    %v63 = vpop.permute.xlu0 %62
    %v65 = vadd.f32 %v55, %v63
    %66 = vset.pattern.permute.xlu0 2
    %67 = vperm.xlu0 %66, %v36
    %v68 = vpop.permute.xlu0 %67
    %v70 = vmul.f32 %v68, %v48
    %72 = vrot.lane.b32.xlu0 %v70, 126
    %v73 = vpop.permute.xlu0 %72
    %v75 = vadd.f32 %v65, %v73
    %76 = vset.pattern.permute.xlu0 6
    %77 = vperm.xlu0 %76, %v36
    %v78 = vpop.permute.xlu0 %77
    %v80 = vadd.f32 %v75, %v78
    %v82 = vcombine.high %v80, %v80
    %v84 = vunpack.c.l.s4 1966171168
    %v85 = vunpack.c.0.s8 %v84
    %v86 = vlaneseq
    %v87 = vshrl.u32 %v86, 7
    %v88 = vsub.s32 %v85, %v87
    %v89 = vrot.slane %v80, %v88
    %v91 = vunpack.c.l.s4 1966171168
    %v92 = vunpack.c.0.s8 %v91
    %v93 = vlaneseq
    %v94 = vshrl.u32 %v93, 7
    %v95 = vsub.s32 %v92, %v94
    %v96 = vrot.slane %v82, %v95
    %v97 = vcombine.high %v89, %v89
    %v98 = vcombine.high %v96, %v96
    %v100 = vunpack.c.l.s4 1966171168
    %v101 = vunpack.c.0.s8 %v100
    %v102 = vlaneseq
    %v103 = vshrl.u32 %v102, 7
    %v104 = vsub.s32 %v101, %v103
    %v105 = vrot.slane %v89, %v104
    %v107 = vunpack.c.l.s4 1966171168
    %v108 = vunpack.c.0.s8 %v107
    %v109 = vlaneseq
    %v110 = vshrl.u32 %v109, 7
    %v111 = vsub.s32 %v108, %v110
    %v112 = vrot.slane %v96, %v111
    %v114 = vunpack.c.l.s4 1966171168
    %v115 = vunpack.c.0.s8 %v114
    %v116 = vlaneseq
    %v117 = vshrl.u32 %v116, 7
    %v118 = vsub.s32 %v115, %v117
    %v119 = vrot.slane %v97, %v118
    %v121 = vunpack.c.l.s4 1966171168
    %v122 = vunpack.c.0.s8 %v121
    %v123 = vlaneseq
    %v124 = vshrl.u32 %v123, 7
    %v125 = vsub.s32 %v122, %v124
    %v126 = vrot.slane %v98, %v125
    %v127 = vcombine.high %v105, %v105
    %v128 = vcombine.high %v112, %v112
    %v129 = vcombine.high %v119, %v119
    %v130 = vcombine.high %v126, %v126
    %vm139 = vcmask 122880
    %140 = vst.msk [vmem:[#allocation8] sm:$0x1] %vm139, %v105
    %141 = vst.msk [vmem:[#allocation8 + $0x2] sm:$0x1] %vm139, %v119
    %142 = vst.msk [vmem:[#allocation8 + $0x4] sm:$0x1] %vm139, %v127
    %143 = vst.msk [vmem:[#allocation8 + $0x6] sm:$0x1] %vm139, %v129
    %144 = vst.msk [vmem:[#allocation8 + $0x8] sm:$0x1] %vm139, %v112
    %145 = vst.msk [vmem:[#allocation8 + $0xa] sm:$0x1] %vm139, %v126
    %146 = vst.msk [vmem:[#allocation8 + $0xc] sm:$0x1] %vm139, %v128
    %147 = vst.msk [vmem:[#allocation8 + $0xe] sm:$0x1] %vm139, %v130
    %v148 = vld [vmem:[#allocation2] sm:$0xff]
    %149 = vset.pattern.permute.xlu0 3
    %150 = vperm.xlu0 %149, %v36
    %v151 = vpop.permute.xlu0 %150
    %v153 = vmul.f32 %v151, %v148
    %v154 = vadd.f32 %v153, 0.0
    %155 = vset.pattern.permute.xlu0 4
    %156 = vperm.xlu0 %155, %v36
    %v157 = vpop.permute.xlu0 %156
    %v159 = vmul.f32 %v157, %v148
    %161 = vrot.lane.b32.xlu0 %v159, 127
    %v162 = vpop.permute.xlu0 %161
    %v164 = vadd.f32 %v154, %v162
    %165 = vset.pattern.permute.xlu0 5
    %166 = vperm.xlu0 %165, %v36
    %v167 = vpop.permute.xlu0 %166
    %v169 = vmul.f32 %v167, %v148
    %171 = vrot.lane.b32.xlu0 %v169, 126
    %v172 = vpop.permute.xlu0 %171
    %v174 = vadd.f32 %v164, %v172
    %175 = vset.pattern.permute.xlu0 7
    %176 = vperm.xlu0 %175, %v36
    %v177 = vpop.permute.xlu0 %176
    %v179 = vadd.f32 %v174, %v177
    %v181 = vcombine.high %v179, %v179
    %v183 = vunpack.c.l.s4 1966171168
    %v184 = vunpack.c.0.s8 %v183
    %v185 = vlaneseq
    %v186 = vshrl.u32 %v185, 7
    %v187 = vsub.s32 %v184, %v186
    %v188 = vrot.slane %v179, %v187
    %v190 = vunpack.c.l.s4 1966171168
    %v191 = vunpack.c.0.s8 %v190
    %v192 = vlaneseq
    %v193 = vshrl.u32 %v192, 7
    %v194 = vsub.s32 %v191, %v193
    %v195 = vrot.slane %v181, %v194
    %v196 = vcombine.high %v188, %v188
    %v197 = vcombine.high %v195, %v195
    %v199 = vunpack.c.l.s4 1966171168
    %v200 = vunpack.c.0.s8 %v199
    %v201 = vlaneseq
    %v202 = vshrl.u32 %v201, 7
    %v203 = vsub.s32 %v200, %v202
    %v204 = vrot.slane %v188, %v203
    %v206 = vunpack.c.l.s4 1966171168
    %v207 = vunpack.c.0.s8 %v206
    %v208 = vlaneseq
    %v209 = vshrl.u32 %v208, 7
    %v210 = vsub.s32 %v207, %v209
    %v211 = vrot.slane %v195, %v210
    %v213 = vunpack.c.l.s4 1966171168
    %v214 = vunpack.c.0.s8 %v213
    %v215 = vlaneseq
    %v216 = vshrl.u32 %v215, 7
    %v217 = vsub.s32 %v214, %v216
    %v218 = vrot.slane %v196, %v217
    %v220 = vunpack.c.l.s4 1966171168
    %v221 = vunpack.c.0.s8 %v220
    %v222 = vlaneseq
    %v223 = vshrl.u32 %v222, 7
    %v224 = vsub.s32 %v221, %v223
    %v225 = vrot.slane %v197, %v224
    %v226 = vcombine.high %v204, %v204
    %v227 = vcombine.high %v211, %v211
    %v228 = vcombine.high %v218, %v218
    %v229 = vcombine.high %v225, %v225
    %238 = vst.msk [vmem:[#allocation8 + $0x1] sm:$0x1] %vm139, %v204
    %239 = vst.msk [vmem:[#allocation8 + $0x3] sm:$0x1] %vm139, %v218
    %240 = vst.msk [vmem:[#allocation8 + $0x5] sm:$0x1] %vm139, %v226
    %241 = vst.msk [vmem:[#allocation8 + $0x7] sm:$0x1] %vm139, %v228
    %242 = vst.msk [vmem:[#allocation8 + $0x9] sm:$0x1] %vm139, %v211
    %243 = vst.msk [vmem:[#allocation8 + $0xb] sm:$0x1] %vm139, %v225
    %244 = vst.msk [vmem:[#allocation8 + $0xd] sm:$0x1] %vm139, %v227
    %245 = vst.msk [vmem:[#allocation8 + $0xf] sm:$0x1] %vm139, %v229
    // Predicated region
    $region18: #{tpu_custom_call.1} parent=1 // pred_check
      _
    $region19: #{tpu_custom_call.1} parent=1 // pred_check_branch
      %247 = sbr.rel (0) target = $region21
    $region20: #{tpu_custom_call.1} parent=1 // pred_region
      %s249 = ssub.s32 256, 256
      %250 = vsyncadd [#allocation5], %s249
      %s251 = sshll.u32 [#allocation8], 4
      %s252 = int_to_ptr.vmem [resolvable:$true] %s251
      %257 = dma.vmem_to_hbm [thread:$0]  %s252, 256, %s2, [#allocation5], 32, 32, 2
    $region21: #{tpu_custom_call.1} parent=1 // pred_fallthru
      _
    // Predicated region
    $region22: #{tpu_custom_call.1} parent=1 // pred_check
      _
    $region23: #{tpu_custom_call.1} parent=1 // pred_check_branch
      %259 = sbr.rel (0) target = $region25
    $region24: #{tpu_custom_call.1} parent=1 // pred_region
      %260 = dma.done [#allocation5], 256
    $region25: #{tpu_custom_call.1} parent=1 // pred_fallthru
      _
    %261 = vsyncpa [#allocation4], 1
    %262 = vsyncpa [#allocation7], 1
    %263 = vsyncpa [#allocation5], 1

</llo_original>
